<compile_context>
chip_gen: v5e
topology: v5e:2x2
jax: 0.10.0
libtpu: 0.0.40
codegen_flags: <defaults>
</compile_context>

<pallas_src>
import jax
import jax.numpy as jnp
from jax import lax
from jax.experimental import pallas as pl
from jax.experimental.pallas import tpu as pltpu


_VMEM_BUDGET = 12 * 1024 * 1024  # conservative vs. v5e's 16 MiB scoped default


def _pooler_kernel(x_ref, w_ref, b_ref, o_ref):
    # x_ref: [BB, H]   selected-token activations
    # w_ref: [BN, H]   weight rows in native PyTorch [out, in] layout
    # b_ref: [1, BN]   bias slice
    # o_ref: [BB, BN]  output slice
    #
    # y[b, n] = sum_h x[b, h] * w[n, h]  (contract last dims of both operands,
    # native-dtype MXU operands, f32 accumulate).
    y = lax.dot_general(
        x_ref[...],
        w_ref[...],
        dimension_numbers=(((1,), (1,)), ((), ())),
        preferred_element_type=jnp.float32,
    )
    y = y + b_ref[...].astype(jnp.float32)
    o_ref[...] = jnp.tanh(y).astype(o_ref.dtype)


def _pick_block_n(hidden_size, w_bytes):
    # Prefer the whole weight in one step: grid over N collapses to 1 and the
    # weight is a single contiguous DMA with zero per-step pipeline overhead.
    if 2 * hidden_size * hidden_size * w_bytes <= _VMEM_BUDGET:
        return hidden_size
    # Otherwise the largest multiple-of-128 divisor of H whose double-buffered
    # tile fits the budget (keeps the output lane-dense, unmasked vst).
    bn = (hidden_size // 128) * 128
    while bn >= 128:
        if hidden_size % bn == 0 and 2 * bn * hidden_size * w_bytes <= _VMEM_BUDGET:
            return bn
        bn -= 128
    return hidden_size  # small / odd H: single full-width block


def _pick_block_b(batch, hidden_size, x_bytes):
    # Typical pooler batches: keep all of B resident (grid over B collapses).
    if 2 * batch * hidden_size * x_bytes <= 2 * 1024 * 1024:
        return batch
    for bb in (1024, 512, 256, 128, 64, 32, 16, 8):
        if batch % bb == 0:
            return bb
    return batch


def bert_pooler(hidden_states, weight, bias, *, block_n=None, block_b=None):
    """hidden_states: [B, S, H]; weight: [H, H] (PyTorch [out, in]); bias: [H] -> [B, H]."""
    B, S, H = hidden_states.shape
    assert weight.shape == (H, H)
    assert bias.shape == (H,)

    # Token selection per the reference module: hidden_states[:, 1].
    x = hidden_states[:, 1, :]
    bias2d = bias.reshape(1, H)  # 2D for TPU layout

    x_bytes = jnp.dtype(hidden_states.dtype).itemsize
    w_bytes = jnp.dtype(weight.dtype).itemsize

    if block_n is None:
        block_n = _pick_block_n(H, w_bytes)
    if block_b is None:
        block_b = _pick_block_b(B, H, x_bytes)
    assert H % block_n == 0
    assert B % block_b == 0
    num_n = H // block_n
    num_b = B // block_b

    # VMEM footprint estimate (double-buffered); raise the scoped limit only
    # when we'd exceed the smallest (v5e) default.
    vmem_est = (
        2 * block_n * H * w_bytes          # weight tiles
        + 2 * block_b * H * x_bytes        # activation tiles
        + 2 * block_n * w_bytes            # bias slice
        + 2 * block_b * block_n * x_bytes  # output tiles
    )
    params = dict(dimension_semantics=("parallel", "parallel"))
    if vmem_est > 14 * 1024 * 1024:
        params["vmem_limit_bytes"] = int(vmem_est * 3 // 2)

    out = pl.pallas_call(
        _pooler_kernel,
        out_shape=jax.ShapeDtypeStruct((B, H), hidden_states.dtype),
        grid_spec=pltpu.PrefetchScalarGridSpec(
            num_scalar_prefetch=0,
            # N is the OUTER axis: the weight / bias index_maps depend only on
            # jn, so they stay resident across all inner B steps (fetched once
            # total when num_n == 1).
            grid=(num_n, num_b),
            in_specs=[
                # Activations for this batch tile.
                pl.BlockSpec((block_b, H), lambda jn, jb: (jb, 0)),
                # Weight rows for this output tile (usually the whole weight).
                pl.BlockSpec((block_n, H), lambda jn, jb: (jn, 0)),
                # Matching bias slice (constant across the inner B axis).
                pl.BlockSpec((1, block_n), lambda jn, jb: (0, jn)),
            ],
            out_specs=pl.BlockSpec((block_b, block_n), lambda jn, jb: (jb, jn)),
        ),
        compiler_params=pltpu.CompilerParams(**params),
    )(x, weight, bias2d)
    return out


if __name__ == "__main__":
    # --- Small f32 case (module-scale sanity, grid collapses to (1, 1)) -----
    key = jax.random.PRNGKey(0)
    B, S, H = 2, 8, 32
    k_x, k_w, k_b = jax.random.split(key, 3)
    hidden_states = jax.random.normal(k_x, (B, S, H), dtype=jnp.float32)
    weight = jax.random.normal(k_w, (H, H), dtype=jnp.float32) * 0.02
    bias = jax.random.normal(k_b, (H,), dtype=jnp.float32) * 0.02

    out = jax.block_until_ready(bert_pooler(hidden_states, weight, bias))
    ref = jnp.tanh(hidden_states[:, 1, :] @ weight.T + bias)
    assert out.shape == (B, H)
    assert jnp.allclose(out, ref, atol=1e-5, rtol=1e-5)

    # --- bf16 case, default (coarse) blocking: grid=(1, 1) ------------------
    B2, S2, H2 = 4, 8, 256
    k_x2, k_w2, k_b2 = jax.random.split(jax.random.PRNGKey(0), 3)
    hs2 = jax.random.normal(k_x2, (B2, S2, H2), dtype=jnp.float32)
    w2 = jax.random.normal(k_w2, (H2, H2), dtype=jnp.float32) * 0.02
    b2 = jax.random.normal(k_b2, (H2,), dtype=jnp.float32) * 0.02

    hs2b = hs2.astype(jnp.bfloat16)
    w2b = w2.astype(jnp.bfloat16)
    b2b = b2.astype(jnp.bfloat16)
    out2 = jax.block_until_ready(bert_pooler(hs2b, w2b, b2b))
    ref2 = jnp.tanh(
        hs2b[:, 1, :].astype(jnp.float32) @ w2b.astype(jnp.float32).T
        + b2b.astype(jnp.float32)
    )
    assert out2.shape == (B2, H2)
    assert out2.dtype == jnp.bfloat16
    assert jnp.allclose(out2.astype(jnp.float32), ref2, atol=2e-2, rtol=2e-2)

    # --- Same bf16 case, explicit N tiling (exercises the grid path, as on
    #     v7x where callers may pass block_n = H // 2 for a 2-TC split) ------
    out3 = jax.block_until_ready(bert_pooler(hs2b, w2b, b2b, block_n=128))
    assert jnp.allclose(out3.astype(jnp.float32), ref2, atol=2e-2, rtol=2e-2)

    print("KERNEL_OK")
</pallas_src>

<mosaic_0001>
module attributes {stable_mosaic.version = 11 : i64} {
  func.func @_pooler_kernel(%arg0: i32, %arg1: i32, %arg2: memref<2x32xf32, #tpu.memory_space<vmem>>, %arg3: memref<32x32xf32, #tpu.memory_space<vmem>>, %arg4: memref<1x32xf32, #tpu.memory_space<vmem>>, %arg5: memref<2x32xf32, #tpu.memory_space<vmem>>) attributes {dimension_semantics = [#tpu.dimension_semantics<parallel>, #tpu.dimension_semantics<parallel>], iteration_bounds = array<i64: 1, 1>, scalar_prefetch = 0 : i64, scratch_operands = 0 : i64, tpu.core_type = #tpu.core_type<tc>, window_params = [{transform_indices = @transform_0, window_bounds = array<i64: 2, 32>}, {transform_indices = @transform_1, window_bounds = array<i64: 32, 32>}, {transform_indices = @transform_2, window_bounds = array<i64: 1, 32>}, {transform_indices = @transform_3, window_bounds = array<i64: 2, 32>}]} {
    %c0 = arith.constant 0 : index
    %c0_0 = arith.constant 0 : index
    %0 = vector.load %arg2[%c0, %c0_0] : memref<2x32xf32, #tpu.memory_space<vmem>>, vector<2x32xf32>
    %c0_1 = arith.constant 0 : index
    %c0_2 = arith.constant 0 : index
    %1 = vector.load %arg3[%c0_1, %c0_2] : memref<32x32xf32, #tpu.memory_space<vmem>>, vector<32x32xf32>
    %cst = arith.constant dense<0.000000e+00> : vector<2x32xf32>
    %2 = tpu.matmul %0, %1, %cst {dimension_numbers = #tpu.dot_dimension_numbers<[1], [1], [0], [0], [0, 0, 1, 0], [], []>} : vector<2x32xf32>, vector<32x32xf32>, vector<2x32xf32> -> vector<2x32xf32>
    %c0_3 = arith.constant 0 : index
    %c0_4 = arith.constant 0 : index
    %3 = vector.load %arg4[%c0_3, %c0_4] : memref<1x32xf32, #tpu.memory_space<vmem>>, vector<1x32xf32>
    %4 = vector.broadcast %3 : vector<1x32xf32> to vector<2x32xf32>
    %5 = arith.addf %2, %4 : vector<2x32xf32>
    %6 = math.tanh %5 : vector<2x32xf32>
    %c0_5 = arith.constant 0 : index
    %c0_6 = arith.constant 0 : index
    %7 = vector.load %arg5[%c0_5, %c0_6] : memref<2x32xf32, #tpu.memory_space<vmem>>, vector<2x32xf32>
    tpu.vector_store %arg5[%c0_5, %c0_6], %6 {strides = array<i32>} : memref<2x32xf32, #tpu.memory_space<vmem>>, vector<2x32xf32>,
    return
  }
  func.func @transform_0(%arg0: i32, %arg1: i32) -> (i32, i32) {
    %c0_i32 = arith.constant 0 : i32
    %c0_i32_0 = arith.constant 0 : i32
    return %arg1, %c0_i32 : i32, i32
  }
  func.func @transform_1(%arg0: i32, %arg1: i32) -> (i32, i32) {
    %c0_i32 = arith.constant 0 : i32
    %c0_i32_0 = arith.constant 0 : i32
    return %arg0, %c0_i32 : i32, i32
  }
  func.func @transform_2(%arg0: i32, %arg1: i32) -> (i32, i32) {
    %c0_i32 = arith.constant 0 : i32
    %c0_i32_0 = arith.constant 0 : i32
    return %c0_i32, %arg0 : i32, i32
  }
  func.func @transform_3(%arg0: i32, %arg1: i32) -> (i32, i32) {
    %c0_i32 = arith.constant 0 : i32
    return %arg1, %arg0 : i32, i32
  }
}

</mosaic_0001>

<llo_original>
// kernel: tpu_custom_call.1
$region0: #{tpu_custom_call.1}
  #allocation0 [shape = 'u32[]', space=smem, size = 0x4, offset = 0x4, fixed_abs, tag = 'smem constant byte address 0x4 - core index']
  #allocation1 [shape = 'u32[72,128]{1,0:T(1,128)}', space=vmem, size = 0x9000, scoped, tag = 'internal scratch']
  %s0 = inlined_call_operand.hbm [shape: f32[2,32], index: 0, kind: input, shape index: {}]
  %s1 = inlined_call_operand.hbm [shape: f32[32,32], index: 1, kind: input, shape index: {}]
  %s2 = inlined_call_operand.vmem [shape: f32[1,32], index: 2, kind: input, shape index: {}]
  %s3 = inlined_call_operand.hbm [shape: f32[2,32], index: 3, kind: output, shape index: {}]
  %s4 = sld [smem:[#allocation0]]
  $region30: #{tpu_custom_call.1} parent=0
    _
  %s6 = ssub.s32 1, %s4
  %s7 = scalar_select 0, %s6, %s4
  $region1: #{tpu_custom_call.1} parent=0
    #allocation2 [shape = 'u8[1024]{0}', space=vmem, size = 0x400, scoped, tag = 'input window, operand 0, single buffered']
    #allocation3 [shape = 's32[1]{0}', space=sflag, size = 0x4, scoped, tag = 'scoped memory for tpu_custom_call.1']
    #allocation4 [shape = 's32[1]{0}', space=sflag, size = 0x4, scoped, tag = 'scoped memory for tpu_custom_call.1']
    #allocation5 [shape = 'u8[16384]{0}', space=vmem, size = 0x4000, scoped, tag = 'input window, operand 1, single buffered']
    #allocation6 [shape = 's32[1]{0}', space=sflag, size = 0x4, scoped, tag = 'scoped memory for tpu_custom_call.1']
    #allocation7 [shape = 'u8[1024]{0}', space=vmem, size = 0x400, scoped, tag = 'output window, operand 0, single buffered']
    %8 = vsyncpa [#allocation3], 0
    %9 = vsyncpa [#allocation6], 0
    %10 = vsyncpa [#allocation4], 0
    // Predicated region
    $region2: #{tpu_custom_call.1} parent=1 // pred_check
      _
    $region3: #{tpu_custom_call.1} parent=1 // pred_check_branch
      %12 = sbr.rel (0) target = $region5
    $region4: #{tpu_custom_call.1} parent=1 // pred_region
      %14 = vsyncadd [#allocation3], 0
      %s16 = sshll.u32 %s0, 4
      %s17 = int_to_ptr.hbm [resolvable:$true] %s16
      %s18 = sshll.u32 [#allocation2], 4
      %s19 = int_to_ptr.vmem [resolvable:$true] %s18
      %21 = dma.hbm_to_vmem [thread:$0]  %s17, 32, %s19, [#allocation3]
    $region5: #{tpu_custom_call.1} parent=1 // pred_fallthru
      _
    // Predicated region
    $region6: #{tpu_custom_call.1} parent=1 // pred_check
      _
    $region7: #{tpu_custom_call.1} parent=1 // pred_check_branch
      %23 = sbr.rel (0) target = $region9
    $region8: #{tpu_custom_call.1} parent=1 // pred_region
      %25 = vsyncadd [#allocation6], 0
      %s26 = sshll.u32 %s1, 4
      %s27 = int_to_ptr.hbm [resolvable:$true] %s26
      %s28 = sshll.u32 [#allocation5], 4
      %s29 = int_to_ptr.vmem [resolvable:$true] %s28
      %34 = dma.hbm_to_vmem [thread:$0]  %s27, 512, %s29, [#allocation6], 128, 128, 8
    $region9: #{tpu_custom_call.1} parent=1 // pred_fallthru
      _
    // Predicated region
    $region10: #{tpu_custom_call.1} parent=1 // pred_check
      _
    $region11: #{tpu_custom_call.1} parent=1 // pred_check_branch
      %36 = sbr.rel (0) target = $region13
    $region12: #{tpu_custom_call.1} parent=1 // pred_region
      _
    $region13: #{tpu_custom_call.1} parent=1 // pred_fallthru
      _
    // Predicated region
    $region14: #{tpu_custom_call.1} parent=1 // pred_check
      _
    $region15: #{tpu_custom_call.1} parent=1 // pred_check_branch
      %38 = sbr.rel (0) target = $region17
    $region16: #{tpu_custom_call.1} parent=1 // pred_region
      %40 = dma.done [#allocation3], 32
    $region17: #{tpu_custom_call.1} parent=1 // pred_fallthru
      _
    // Predicated region
    $region18: #{tpu_custom_call.1} parent=1 // pred_check
      _
    $region19: #{tpu_custom_call.1} parent=1 // pred_check_branch
      %42 = sbr.rel (0) target = $region21
    $region20: #{tpu_custom_call.1} parent=1 // pred_region
      %44 = dma.done [#allocation6], 512
    $region21: #{tpu_custom_call.1} parent=1 // pred_fallthru
      _
    %v45 = vld [vmem:[#allocation2] sm:$0x3]
    %v46 = vld [vmem:[#allocation5] sm:$0xff]
    %v47 = vld [vmem:[#allocation5 + $0x8] sm:$0xff]
    %v48 = vld [vmem:[#allocation5 + $0x10] sm:$0xff]
    %v49 = vld [vmem:[#allocation5 + $0x18] sm:$0xff]
    %v50 = vld [vmem:[%s2] sm:$0x1]
    %v52 = vperm.slane %v50, 0
    %vm54 = vcmask 261120
    %v56 = vsel %vm54, %v45, 0
    %v59 = vsel %vm54, %v46, 0
    %v62 = vsel %vm54, %v47, 0
    %v65 = vsel %vm54, %v48, 0
    %v68 = vsel %vm54, %v49, 0
    %70 = vmatpush.xpose.msra.mxu0 0.0
    %71 = vmatpush.xpose.msra.mxu0 0.0
    %72 = vmatpush.xpose.msra.mxu0 0.0
    %73 = vmatpush.xpose.msra.mxu0 0.0
    %74 = vmatpush.xpose.msra.mxu0 0.0
    %75 = vmatpush.xpose.msra.mxu0 0.0
    %76 = vmatpush.xpose.msra.mxu0 0.0
    %77 = vmatpush.xpose.msra.mxu0 0.0
    %78 = vmatpush.xpose.msra.mxu0 0.0
    %79 = vmatpush.xpose.msra.mxu0 0.0
    %80 = vmatpush.xpose.msra.mxu0 0.0
    %81 = vmatpush.xpose.msra.mxu0 0.0
    %82 = vmatpush.xpose.msra.mxu0 %v68
    %83 = vmatpush.xpose.msra.mxu0 %v65
    %84 = vmatpush.xpose.msra.mxu0 %v62
    %85 = vmatpush.xpose.msra.mxu0 %v59
    %86 = vmatmul.f32.gmra.mxu0 %v56
    %v87 = vpop.f32.mrf.mxu0
    %v88 = vadd.f32 %v52, %v87
    %89 = vdwg.mxu0
    %v90 = vtanh.pop %v88
    %vm91 = vcmask 254976
    %92 = vst.msk [vmem:[#allocation7] sm:$0x3] %vm91, %v90
    // Predicated region
    $region22: #{tpu_custom_call.1} parent=1 // pred_check
      _
    $region23: #{tpu_custom_call.1} parent=1 // pred_check_branch
      %94 = sbr.rel (0) target = $region25
    $region24: #{tpu_custom_call.1} parent=1 // pred_region
      %96 = vsyncadd [#allocation4], 0
      %s98 = sshll.u32 [#allocation7], 4
      %s99 = int_to_ptr.vmem [resolvable:$true] %s98
      %s100 = sshll.u32 %s3, 4
      %s101 = int_to_ptr.hbm [resolvable:$true] %s100
      %103 = dma.vmem_to_hbm [thread:$0]  %s99, 32, %s101, [#allocation4]
    $region25: #{tpu_custom_call.1} parent=1 // pred_fallthru
      _
    // Predicated region
    $region26: #{tpu_custom_call.1} parent=1 // pred_check
      _
    $region27: #{tpu_custom_call.1} parent=1 // pred_check_branch
      %105 = sbr.rel (0) target = $region29
    $region28: #{tpu_custom_call.1} parent=1 // pred_region
      %107 = dma.done [#allocation4], 32
    $region29: #{tpu_custom_call.1} parent=1 // pred_fallthru
      _
    %108 = vsyncpa [#allocation3], 1
    %109 = vsyncpa [#allocation6], 1
    %110 = vsyncpa [#allocation4], 1

</llo_original>
